<compile_context>
chip_gen: v6e
topology: v6e:2x2x1
jax: 0.10.0
libtpu: 0.0.40
codegen_flags: <defaults>
</compile_context>

<pallas_src>
import jax
import jax.numpy as jnp
from jax.experimental import pallas as pl
from jax.experimental.pallas import tpu as pltpu

_LANE = 512                            # lane-dense last dim (multiple of 128)
_TARGET_BLOCK_BYTES = 2 * 1024 * 1024  # ~2 MiB block; 2 arrays x 2 buffers = 8 MiB
_MIN_GRID_STEPS = 8                    # enough tiles for v7x megacore + pipelining


def _swish_kernel(beta_ref, x_ref, o_ref):
    # beta_ref: SMEM scalar (shape (1,)); x_ref / o_ref: (tr, lane) VMEM tiles.
    beta = beta_ref[0]                          # single hoisted scalar read
    x = x_ref[...].astype(jnp.float32)          # cast first (v5e has no bf16 VPU)
    o_ref[...] = (x * jax.nn.sigmoid(beta * x)).astype(o_ref.dtype)


def _sublane(itemsize: int) -> int:
    # Sublane multiple for the second-minor block dim: 8 (f32), 16 (bf16), 32 (i8).
    return 8 * max(1, 4 // itemsize)


def _pick_row_tile(rows: int, lane: int, itemsize: int) -> int:
    sub = _sublane(itemsize)
    if rows <= sub:
        # Single full-extent block (legal only because it equals the array extent).
        return rows
    # ~2 MiB block, rounded to a sublane multiple.
    tr = _TARGET_BLOCK_BYTES // (lane * itemsize)
    tr = max(sub, (tr // sub) * sub)
    # Keep at least ~8 grid steps so v7x megacore sharding / DMA overlap have work.
    if pl.cdiv(rows, tr) < _MIN_GRID_STEPS:
        tr_small = pl.cdiv(rows, _MIN_GRID_STEPS)
        tr_small = max(sub, pl.cdiv(tr_small, sub) * sub)
        tr = min(tr, tr_small)
    return tr


def swish(x: jax.Array, beta) -> jax.Array:
    """Swish / SiLU with trainable scalar beta, computed in a Pallas kernel."""
    orig_shape = x.shape
    orig_dtype = x.dtype
    n = x.size
    if n == 0:
        return x

    itemsize = jnp.dtype(orig_dtype).itemsize
    last = orig_shape[-1] if len(orig_shape) else 1
    sub = _sublane(itemsize)

    # ---- Lane-dense 2D slab, preferring zero-copy (pad-free) layouts. ----
    if n % _LANE == 0:
        lane, padded = _LANE, False                 # fast path: pure reshape
    elif last % 128 == 0 and last * itemsize * sub <= _TARGET_BLOCK_BYTES:
        lane, padded = last, False                  # fast path: hidden % 128 == 0
    else:
        lane, padded = _LANE, True                  # slow path: pad tail to a lane

    if padded:
        rows = pl.cdiv(n, lane)
        flat = jnp.pad(x.reshape(-1), (0, rows * lane - n))
        x2d = flat.reshape(rows, lane)
    else:
        rows = n // lane
        x2d = x.reshape(rows, lane)

    tr = _pick_row_tile(rows, lane, itemsize)
    grid = (pl.cdiv(rows, tr),)                     # ragged last block is masked

    beta_arr = jnp.asarray(beta, dtype=jnp.float32).reshape((1,))

    cost = pl.CostEstimate(
        flops=6 * n, transcendentals=n, bytes_accessed=2 * n * itemsize)

    out2d = pl.pallas_call(
        _swish_kernel,
        out_shape=jax.ShapeDtypeStruct((rows, lane), orig_dtype),
        grid_spec=pl.GridSpec(
            grid=grid,
            in_specs=[
                pl.BlockSpec(memory_space=pltpu.MemorySpace.SMEM),  # beta scalar
                pl.BlockSpec((tr, lane), lambda i: (i, 0)),          # x row tile
            ],
            out_specs=pl.BlockSpec((tr, lane), lambda i: (i, 0)),
        ),
        compiler_params=pltpu.CompilerParams(
            dimension_semantics=("parallel",),       # megacore sharding on v7x
        ),
        cost_estimate=cost,
    )(beta_arr, x2d)

    if padded:
        return out2d.reshape(-1)[:n].reshape(orig_shape)
    return out2d.reshape(orig_shape)


if __name__ == "__main__":
    beta = jnp.float32(1.0)  # matches nn.Parameter(torch.tensor(1.0))

    # Small LLM-ish activation: (batch=2, seq=8, hidden=32). n % 512 == 0 ->
    # zero-copy single-block path.
    x = jax.random.normal(jax.random.PRNGKey(0), (2, 8, 32), dtype=jnp.float32)
    y = swish(x, beta)
    jax.block_until_ready(y)
    y_ref = x * jax.nn.sigmoid(beta * x)
    assert y.shape == x.shape and y.dtype == x.dtype
    assert jnp.max(jnp.abs(y - y_ref)) < 1e-6

    # Lane-aligned multi-block path (hidden multiple of 128 -> no pad, grid of 8).
    x2 = jax.random.normal(jax.random.PRNGKey(1), (4, 64, 256), dtype=jnp.float32)
    y2 = swish(x2, beta)
    jax.block_until_ready(y2)
    y2_ref = x2 * jax.nn.sigmoid(beta * x2)
    assert y2.shape == x2.shape and y2.dtype == x2.dtype
    assert jnp.max(jnp.abs(y2 - y2_ref)) < 1e-6

    # Misaligned shape exercises the pad path + ragged (masked) last block.
    x3 = jax.random.normal(jax.random.PRNGKey(2), (3, 99, 37), dtype=jnp.float32)
    y3 = swish(x3, beta)
    jax.block_until_ready(y3)
    y3_ref = x3 * jax.nn.sigmoid(beta * x3)
    assert y3.shape == x3.shape and y3.dtype == x3.dtype
    assert jnp.max(jnp.abs(y3 - y3_ref)) < 1e-6

    print("KERNEL_OK")
</pallas_src>

<mosaic_0001>
module attributes {stable_mosaic.version = 11 : i64} {
  func.func @_swish_kernel(%arg0: i32, %arg1: memref<1xf32, #tpu.memory_space<smem>>, %arg2: memref<1x512xf32, #tpu.memory_space<vmem>>, %arg3: memref<1x512xf32, #tpu.memory_space<vmem>>) attributes {dimension_semantics = [#tpu.dimension_semantics<parallel>], iteration_bounds = array<i64: 1>, scalar_prefetch = 0 : i64, scratch_operands = 0 : i64, tpu.core_type = #tpu.core_type<tc>, window_params = [{transform_indices = @transform_0, window_bounds = array<i64: 1>}, {transform_indices = @transform_1, window_bounds = array<i64: 1, 512>}, {transform_indices = @transform_2, window_bounds = array<i64: 1, 512>}]} {
    %c0 = arith.constant 0 : index
    %0 = memref.load %arg1[%c0] : memref<1xf32, #tpu.memory_space<smem>>
    %c0_0 = arith.constant 0 : index
    %c0_1 = arith.constant 0 : index
    %1 = vector.load %arg2[%c0_0, %c0_1] : memref<1x512xf32, #tpu.memory_space<vmem>>, vector<1x512xf32>
    %2 = vector.broadcast %0 : f32 to vector<1x512xf32>
    %3 = arith.mulf %2, %1 : vector<1x512xf32>
    %4 = arith.negf %3 : vector<1x512xf32>
    %5 = math.exp %4 : vector<1x512xf32>
    %cst = arith.constant 1.000000e+00 : f32
    %6 = vector.broadcast %cst : f32 to vector<1x512xf32>
    %7 = arith.addf %6, %5 : vector<1x512xf32>
    %8 = arith.divf %6, %7 : vector<1x512xf32>
    %9 = arith.mulf %1, %8 : vector<1x512xf32>
    %c0_2 = arith.constant 0 : index
    %c0_3 = arith.constant 0 : index
    %10 = vector.load %arg3[%c0_2, %c0_3] : memref<1x512xf32, #tpu.memory_space<vmem>>, vector<1x512xf32>
    tpu.vector_store %arg3[%c0_2, %c0_3], %9 {strides = array<i32>} : memref<1x512xf32, #tpu.memory_space<vmem>>, vector<1x512xf32>,
    return
  }
  func.func @transform_0(%arg0: i32) -> i32 {
    %c0_i32 = arith.constant 0 : i32
    %c0_i32_0 = arith.constant 0 : i32
    return %c0_i32 : i32
  }
  func.func @transform_1(%arg0: i32) -> (i32, i32) {
    %c0_i32 = arith.constant 0 : i32
    %c0_i32_0 = arith.constant 0 : i32
    return %arg0, %c0_i32 : i32, i32
  }
  func.func @transform_2(%arg0: i32) -> (i32, i32) {
    %c0_i32 = arith.constant 0 : i32
    %c0_i32_0 = arith.constant 0 : i32
    return %arg0, %c0_i32 : i32, i32
  }
}

</mosaic_0001>

<llo_original>
// kernel: tpu_custom_call.1
$region0: #{tpu_custom_call.1}
  #allocation0 [shape = 'u32[]', space=smem, size = 0x4, offset = 0x4, fixed_abs, tag = 'smem constant byte address 0x4 - core index']
  #allocation1 [shape = 'u32[144,128]{1,0:T(1,128)}', space=vmem, size = 0x12000, scoped, tag = 'internal scratch']
  #allocation2 [shape = 'f32[1]{0:T(128)S(6)}', space=smem, size = 0x200, scoped, tag = 'scoped memory for tpu_custom_call.1']
  %s0 = inlined_call_operand.<no memory space> [shape: f32[1], index: 0, kind: input, shape index: {}]
  %s1 = inlined_call_operand.hbm [shape: f32[1,512], index: 1, kind: input, shape index: {}]
  %s2 = inlined_call_operand.hbm [shape: f32[1,512], index: 2, kind: output, shape index: {}]
  %s3 = sld [smem:[#allocation0]]
  $region22: #{tpu_custom_call.1} parent=0
    _
  %s5 = ssub.s32 1, %s3
  %s6 = scalar_select 0, %s5, %s3
  %7 = sst [smem:[#allocation2]] %s0
  $region1: #{tpu_custom_call.1} parent=0
    #allocation3 [shape = 'u8[2048]{0}', space=vmem, size = 0x800, scoped, tag = 'input window, operand 1, single buffered']
    #allocation4 [shape = 's32[1]{0}', space=sflag, size = 0x4, scoped, tag = 'scoped memory for tpu_custom_call.1']
    #allocation5 [shape = 's32[1]{0}', space=sflag, size = 0x4, scoped, tag = 'scoped memory for tpu_custom_call.1']
    #allocation6 [shape = 'u8[2048]{0}', space=vmem, size = 0x800, scoped, tag = 'output window, operand 0, single buffered']
    %8 = vsyncpa [#allocation4], 0
    %9 = vsyncpa [#allocation5], 0
    // Predicated region
    $region2: #{tpu_custom_call.1} parent=1 // pred_check
      _
    $region3: #{tpu_custom_call.1} parent=1 // pred_check_branch
      %11 = sbr.rel (0) target = $region5
    $region4: #{tpu_custom_call.1} parent=1 // pred_region
      _
    $region5: #{tpu_custom_call.1} parent=1 // pred_fallthru
      _
    // Predicated region
    $region6: #{tpu_custom_call.1} parent=1 // pred_check
      _
    $region7: #{tpu_custom_call.1} parent=1 // pred_check_branch
      %13 = sbr.rel (0) target = $region9
    $region8: #{tpu_custom_call.1} parent=1 // pred_region
      %s15 = ssub.s32 64, 64
      %16 = vsyncadd [#allocation4], %s15
      %s18 = sshll.u32 [#allocation3], 4
      %s19 = int_to_ptr.vmem [resolvable:$true] %s18
      %21 = dma.hbm_to_vmem [thread:$0]  %s1, 64, %s19, [#allocation4]
    $region9: #{tpu_custom_call.1} parent=1 // pred_fallthru
      _
    // Predicated region
    $region10: #{tpu_custom_call.1} parent=1 // pred_check
      _
    $region11: #{tpu_custom_call.1} parent=1 // pred_check_branch
      %23 = sbr.rel (0) target = $region13
    $region12: #{tpu_custom_call.1} parent=1 // pred_region
      %24 = dma.done [#allocation4], 64
    $region13: #{tpu_custom_call.1} parent=1 // pred_fallthru
      _
    %s25 = sld [smem:[#allocation2]]
    %v26 = vld [vmem:[#allocation3] sm:$0xf]
    %v27 = vstv %s25
    %v28 = vmul.f32 %v27, %v26
    %v29 = vxor.u32 %v28, 2147483648
    %v30 = vmul.f32 %v29, 1.442695
    %v31 = vpow.pop %v30
    %v32 = vadd.f32 %v31, 1.0
    %v33 = vrcp.pop %v32
    %v34 = vmul.f32 1.0, %v33
    %v35 = vmul.f32 %v26, %v34
    %v36 = vlaneseq
    %vm37 = vcmp.ge.s32.totalorder %v36, 0
    %vm38 = vcmp.lt.s32.totalorder %v36, 512
    %vm39 = vmand %vm37, %vm38
    %40 = vst.msk [vmem:[#allocation6] sm:$0xf] %vm39, %v35
    // Predicated region
    $region14: #{tpu_custom_call.1} parent=1 // pred_check
      _
    $region15: #{tpu_custom_call.1} parent=1 // pred_check_branch
      %42 = sbr.rel (0) target = $region17
    $region16: #{tpu_custom_call.1} parent=1 // pred_region
      %s44 = ssub.s32 64, 64
      %45 = vsyncadd [#allocation5], %s44
      %s47 = sshll.u32 [#allocation6], 4
      %s48 = int_to_ptr.vmem [resolvable:$true] %s47
      %50 = dma.vmem_to_hbm [thread:$0]  %s48, 64, %s2, [#allocation5]
    $region17: #{tpu_custom_call.1} parent=1 // pred_fallthru
      _
    // Predicated region
    $region18: #{tpu_custom_call.1} parent=1 // pred_check
      _
    $region19: #{tpu_custom_call.1} parent=1 // pred_check_branch
      %52 = sbr.rel (0) target = $region21
    $region20: #{tpu_custom_call.1} parent=1 // pred_region
      %53 = dma.done [#allocation5], 64
    $region21: #{tpu_custom_call.1} parent=1 // pred_fallthru
      _
    %54 = vsyncpa [#allocation4], 1
    %55 = vsyncpa [#allocation5], 1

</llo_original>
